<compile_context>
chip_gen: v7x
topology: tpu7x:2x2x1
jax: 0.10.0
libtpu: 0.0.40
codegen_flags: <defaults>
</compile_context>

<pallas_src>
import functools

import jax
import jax.numpy as jnp
from jax import lax
from jax.experimental import pallas as pl
from jax.experimental.pallas import tpu as pltpu


# --------------------------------------------------------------------------
# Pallas kernel: fused 3-layer MLP (Linear -> ReLU -> Linear -> ReLU -> Linear)
# The final layer is emitted transposed: out_t[(d_out, block_b)] so the store
# is lane-dense on the batch axis and writes no padding.
# --------------------------------------------------------------------------
def mlp_kernel(x_ref, w1_ref, b1_ref, w2_ref, b2_ref, w3t_ref, b3t_ref, ot_ref,
               *, compute_dtype):
    x = x_ref[...].astype(compute_dtype)

    h = jnp.dot(x, w1_ref[...], preferred_element_type=jnp.float32) + b1_ref[...]
    h = jnp.maximum(h, 0.0)                                    # nn.ReLU (f32 on VPU)

    h = jnp.dot(h.astype(compute_dtype), w2_ref[...],
                preferred_element_type=jnp.float32) + b2_ref[...]
    h = jnp.maximum(h, 0.0)                                    # nn.ReLU

    # (d_out, block_b) = W3^T . h^T, as an NT matmul (contract hidden dim of both).
    out_t = lax.dot_general(
        w3t_ref[...], h.astype(compute_dtype),
        dimension_numbers=(((1,), (1,)), ((), ())),
        preferred_element_type=jnp.float32) + b3t_ref[...]
    ot_ref[...] = out_t.astype(ot_ref.dtype)                   # lane-dense on batch


# --------------------------------------------------------------------------
# Wrapper
# --------------------------------------------------------------------------
_MAX_BLOCK_B = 8192   # per-tile VMEM at 8192 rows: < 2 MiB (fits v5e's 16 MiB default)


def default_compute_dtype():
    """bf16 MXU operands on v6e/v7x; f32 on v5-class and older (no bf16 VPU)."""
    try:
        kind = jax.devices()[0].device_kind.lower()
        if any(v in kind for v in ("v2", "v3", "v4", "v5")):
            return jnp.float32
    except Exception:
        pass
    return jnp.bfloat16


def _choose_block_b(B, block_b):
    """Batch tile: whole batch if it fits the cap (no forced split on single-TC
    chips); otherwise a 128-multiple tile (lane dim of the transposed output)."""
    if block_b is None:
        return B if B <= _MAX_BLOCK_B else _MAX_BLOCK_B
    block_b = min(block_b, B)
    if block_b != B and block_b % 128 != 0:
        block_b = max(128, (block_b // 128) * 128)
    return block_b


def prepare_params(params, compute_dtype=jnp.bfloat16):
    """One-time weight prep: cast W's for the MXU, pre-transpose the last layer.

    params: w1 (D_in,H1), b1 (1,H1), w2 (H1,H2), b2 (1,H2), w3 (H2,D_out),
            b3 (1,D_out), all float32.
    """
    return {
        "w1": params["w1"].astype(compute_dtype),
        "b1": params["b1"].astype(jnp.float32),
        "w2": params["w2"].astype(compute_dtype),
        "b2": params["b2"].astype(jnp.float32),
        "w3t": params["w3"].T.astype(compute_dtype),        # (D_out, H2)
        "b3t": params["b3"].T.astype(jnp.float32),          # (D_out, 1)
    }


def _xla_forward(x, prepared, compute_dtype):
    """Small-batch fallback: plain jnp/XLA with the same mixed-precision recipe."""
    h = jnp.dot(x.astype(compute_dtype), prepared["w1"],
                preferred_element_type=jnp.float32) + prepared["b1"]
    h = jnp.maximum(h, 0.0)
    h = jnp.dot(h.astype(compute_dtype), prepared["w2"],
                preferred_element_type=jnp.float32) + prepared["b2"]
    h = jnp.maximum(h, 0.0)
    out_t = lax.dot_general(prepared["w3t"], h.astype(compute_dtype),
                            dimension_numbers=(((1,), (1,)), ((), ())),
                            preferred_element_type=jnp.float32) + prepared["b3t"]
    return out_t.T.astype(x.dtype)


def policy_mlp_forward(x, prepared, *, compute_dtype=None, block_b=None,
                       min_pallas_batch=512, transpose_output=False):
    """Fused PolicyMLP forward pass.

    x: (B, D_in) float32.  prepared: output of prepare_params().
    Returns (B, D_out) by default; (D_out, B) if transpose_output=True (saves the
    tiny wrapper transpose for consumers that can take the transposed layout).
    """
    if compute_dtype is None:
        compute_dtype = prepared["w1"].dtype

    B, d_in = x.shape
    h1 = prepared["w1"].shape[1]
    h2 = prepared["w2"].shape[1]
    d_out = prepared["w3t"].shape[0]

    # Small-batch gate: pallas_call fixed cost dominates a ~10 KFLOP/row MLP.
    if B < min_pallas_batch:
        out = _xla_forward(x, prepared, compute_dtype)
        return out.T if transpose_output else out

    block_b = _choose_block_b(B, block_b)
    grid = (pl.cdiv(B, block_b),)
    # NOTE: when B % block_b != 0 the tail tile computes on undefined rows; their
    # outputs are dropped on writeback (safe: all ops are purely row-wise).

    full = lambda shape: pl.BlockSpec(shape, lambda i: (0,) * len(shape))

    itemsize = jnp.dtype(x.dtype).itemsize
    cost = pl.CostEstimate(
        flops=2 * B * (d_in * h1 + h1 * h2 + h2 * d_out),
        transcendentals=0,
        bytes_accessed=(B * d_in * itemsize + B * d_out * 4
                        + (d_in * h1 + h1 * h2 + h2 * d_out) * jnp.dtype(compute_dtype).itemsize
                        + (h1 + h2 + d_out) * 4),
    )

    out_t = pl.pallas_call(
        functools.partial(mlp_kernel, compute_dtype=compute_dtype),
        out_shape=jax.ShapeDtypeStruct((d_out, B), x.dtype),
        grid_spec=pltpu.PrefetchScalarGridSpec(
            num_scalar_prefetch=0,
            grid=grid,
            in_specs=[
                pl.BlockSpec((block_b, d_in), lambda i: (i, 0)),   # x tile (pipelined)
                full((d_in, h1)), full((1, h1)),                   # resident tiny weights
                full((h1, h2)), full((1, h2)),
                full((d_out, h2)), full((d_out, 1)),
            ],
            out_specs=pl.BlockSpec((d_out, block_b), lambda i: (0, i)),
        ),
        compiler_params=pltpu.CompilerParams(
            dimension_semantics=("parallel",),   # batch axis -> both TCs on v7x
        ),
        cost_estimate=cost,
    )(x, prepared["w1"], prepared["b1"], prepared["w2"], prepared["b2"],
      prepared["w3t"], prepared["b3t"])

    if transpose_output:
        return out_t
    return out_t.T   # cheap: 16 B/row each way (no padded re-read)


# --------------------------------------------------------------------------
# Deterministic parameter init (mirrors orthogonal_net: orthogonal W, zero b)
# --------------------------------------------------------------------------
def orthogonal_init(key, out_dim, in_dim, gain=1.0, dtype=jnp.float32):
    """nn.init.orthogonal_ semantics on a (out_dim, in_dim) matrix."""
    rows, cols = out_dim, in_dim
    flat = jax.random.normal(key, (max(rows, cols), min(rows, cols)), dtype=jnp.float32)
    q, r = jnp.linalg.qr(flat)
    d = jnp.diag(r)
    q = q * jnp.where(d >= 0, 1.0, -1.0)[None, :]
    if rows < cols:
        q = q.T
    w = gain * q[:rows, :cols]
    return w.astype(dtype)


def make_params(dims, key):
    """Build PolicyMLP params for dims = (d_in, h1, h2, ..., d_out)."""
    params = {}
    keys = jax.random.split(key, len(dims) - 1)
    for li, (din, dout) in enumerate(zip(dims[:-1], dims[1:]), start=1):
        w_pt = orthogonal_init(keys[li - 1], dout, din)       # PyTorch layout (out, in)
        params[f"w{li}"] = jnp.asarray(w_pt.T)                # kernel layout (in, out)
        params[f"b{li}"] = jnp.zeros((1, dout), jnp.float32)  # constant_(bias, 0)
    return params


def reference_forward_f32(x, params):
    h = jnp.maximum(x @ params["w1"] + params["b1"], 0.0)
    h = jnp.maximum(h @ params["w2"] + params["b2"], 0.0)
    return h @ params["w3"] + params["b3"]


def reference_forward_mixed(x, params, compute_dtype):
    """Same compute_dtype-operand / f32-accumulate recipe as the kernel."""
    w1 = params["w1"].astype(compute_dtype)
    w2 = params["w2"].astype(compute_dtype)
    w3 = params["w3"].astype(compute_dtype)
    h = jnp.dot(x.astype(compute_dtype), w1,
                preferred_element_type=jnp.float32) + params["b1"]
    h = jnp.maximum(h, 0.0)
    h = jnp.dot(h.astype(compute_dtype), w2,
                preferred_element_type=jnp.float32) + params["b2"]
    h = jnp.maximum(h, 0.0)
    return jnp.dot(h.astype(compute_dtype), w3,
                   preferred_element_type=jnp.float32) + params["b3"]


# TODO(synk): dropout / LayerNorm / output_activation_fn / squeeze_output branches of
# PolicyMLP are inactive with the default constructor args and are omitted here.

if __name__ == "__main__":
    dims = (16, 32, 32, 4)   # (obs_dim, hidden, hidden, action_dim)

    key = jax.random.PRNGKey(0)
    k_params, k_x1, k_x2, k_x3 = jax.random.split(key, 4)
    params = make_params(dims, k_params)

    compute_dtype = default_compute_dtype()
    prepared = prepare_params(params, compute_dtype)     # one-time weight prep

    # 1) Pallas path, single tile (block_b == B, no forced split).
    x_a = jax.random.normal(k_x1, (128, dims[0]), jnp.float32)
    out_a = jax.block_until_ready(
        policy_mlp_forward(x_a, prepared, compute_dtype=compute_dtype,
                           min_pallas_batch=0))

    # 2) Pallas path, multi-step pipelined grid (block_b=256 -> grid=(4,)).
    x_b = jax.random.normal(k_x2, (1024, dims[0]), jnp.float32)
    out_b = jax.block_until_ready(
        policy_mlp_forward(x_b, prepared, compute_dtype=compute_dtype,
                           min_pallas_batch=0, block_b=256))

    # 3) Small-batch gate -> plain jnp/XLA fallback (common PPO inference path).
    x_c = jax.random.normal(k_x3, (8, dims[0]), jnp.float32)
    out_c = jax.block_until_ready(
        policy_mlp_forward(x_c, prepared, compute_dtype=compute_dtype))

    for x, out in ((x_a, out_a), (x_b, out_b), (x_c, out_c)):
        assert out.shape == (x.shape[0], dims[-1])
        ref_mixed = reference_forward_mixed(x, params, compute_dtype)  # kernel recipe
        ref_f32 = reference_forward_f32(x, params)                     # full precision
        assert jnp.allclose(out, ref_mixed, atol=2e-3, rtol=2e-3), "kernel vs mixed ref"
        assert jnp.allclose(out, ref_f32, atol=5e-2, rtol=5e-2), "kernel vs f32 ref"

    print("KERNEL_OK")
</pallas_src>

<mosaic_0001>
module attributes {stable_mosaic.version = 11 : i64} {
  func.func @mlp_kernel(%arg0: i32, %arg1: memref<128x16xf32, #tpu.memory_space<vmem>>, %arg2: memref<16x32xbf16, #tpu.memory_space<vmem>>, %arg3: memref<1x32xf32, #tpu.memory_space<vmem>>, %arg4: memref<32x32xbf16, #tpu.memory_space<vmem>>, %arg5: memref<1x32xf32, #tpu.memory_space<vmem>>, %arg6: memref<4x32xbf16, #tpu.memory_space<vmem>>, %arg7: memref<4x1xf32, #tpu.memory_space<vmem>>, %arg8: memref<4x128xf32, #tpu.memory_space<vmem>>) attributes {dimension_semantics = [#tpu.dimension_semantics<parallel>], iteration_bounds = array<i64: 1>, scalar_prefetch = 0 : i64, scratch_operands = 0 : i64, tpu.core_type = #tpu.core_type<tc>, window_params = [{transform_indices = @transform_0, window_bounds = array<i64: 128, 16>}, {pipeline_mode = #tpu.pipeline_mode<synchronous>, transform_indices = @transform_1, window_bounds = array<i64: 16, 32>}, {pipeline_mode = #tpu.pipeline_mode<synchronous>, transform_indices = @transform_2, window_bounds = array<i64: 1, 32>}, {pipeline_mode = #tpu.pipeline_mode<synchronous>, transform_indices = @transform_3, window_bounds = array<i64: 32, 32>}, {pipeline_mode = #tpu.pipeline_mode<synchronous>, transform_indices = @transform_4, window_bounds = array<i64: 1, 32>}, {pipeline_mode = #tpu.pipeline_mode<synchronous>, transform_indices = @transform_5, window_bounds = array<i64: 4, 32>}, {pipeline_mode = #tpu.pipeline_mode<synchronous>, transform_indices = @transform_6, window_bounds = array<i64: 4, 1>}, {transform_indices = @transform_7, window_bounds = array<i64: 4, 128>}]} {
    %c0 = arith.constant 0 : index
    %c0_0 = arith.constant 0 : index
    %0 = vector.load %arg1[%c0, %c0_0] : memref<128x16xf32, #tpu.memory_space<vmem>>, vector<128x16xf32>
    %1 = arith.truncf %0 : vector<128x16xf32> to vector<128x16xbf16>
    %c0_1 = arith.constant 0 : index
    %c0_2 = arith.constant 0 : index
    %2 = vector.load %arg2[%c0_1, %c0_2] : memref<16x32xbf16, #tpu.memory_space<vmem>>, vector<16x32xbf16>
    %cst = arith.constant dense<0.000000e+00> : vector<128x32xf32>
    %3 = tpu.matmul %1, %2, %cst {dimension_numbers = #tpu.dot_dimension_numbers<[1], [0], [0], [1], [0, 0, 1, 1], [], []>} : vector<128x16xbf16>, vector<16x32xbf16>, vector<128x32xf32> -> vector<128x32xf32>
    %c0_3 = arith.constant 0 : index
    %c0_4 = arith.constant 0 : index
    %4 = vector.load %arg3[%c0_3, %c0_4] : memref<1x32xf32, #tpu.memory_space<vmem>>, vector<1x32xf32>
    %5 = vector.broadcast %4 : vector<1x32xf32> to vector<128x32xf32>
    %6 = arith.addf %3, %5 : vector<128x32xf32>
    %cst_5 = arith.constant 0.000000e+00 : f32
    %7 = vector.broadcast %cst_5 : f32 to vector<128x32xf32>
    %8 = arith.maximumf %6, %7 : vector<128x32xf32>
    %9 = arith.truncf %8 : vector<128x32xf32> to vector<128x32xbf16>
    %c0_6 = arith.constant 0 : index
    %c0_7 = arith.constant 0 : index
    %10 = vector.load %arg4[%c0_6, %c0_7] : memref<32x32xbf16, #tpu.memory_space<vmem>>, vector<32x32xbf16>
    %cst_8 = arith.constant dense<0.000000e+00> : vector<128x32xf32>
    %11 = tpu.matmul %9, %10, %cst_8 {dimension_numbers = #tpu.dot_dimension_numbers<[1], [0], [0], [1], [0, 0, 1, 1], [], []>} : vector<128x32xbf16>, vector<32x32xbf16>, vector<128x32xf32> -> vector<128x32xf32>
    %c0_9 = arith.constant 0 : index
    %c0_10 = arith.constant 0 : index
    %12 = vector.load %arg5[%c0_9, %c0_10] : memref<1x32xf32, #tpu.memory_space<vmem>>, vector<1x32xf32>
    %13 = vector.broadcast %12 : vector<1x32xf32> to vector<128x32xf32>
    %14 = arith.addf %11, %13 : vector<128x32xf32>
    %cst_11 = arith.constant 0.000000e+00 : f32
    %15 = vector.broadcast %cst_11 : f32 to vector<128x32xf32>
    %16 = arith.maximumf %14, %15 : vector<128x32xf32>
    %c0_12 = arith.constant 0 : index
    %c0_13 = arith.constant 0 : index
    %17 = vector.load %arg6[%c0_12, %c0_13] : memref<4x32xbf16, #tpu.memory_space<vmem>>, vector<4x32xbf16>
    %18 = arith.truncf %16 : vector<128x32xf32> to vector<128x32xbf16>
    %cst_14 = arith.constant dense<0.000000e+00> : vector<4x128xf32>
    %19 = tpu.matmul %17, %18, %cst_14 {dimension_numbers = #tpu.dot_dimension_numbers<[1], [1], [0], [0], [0, 0, 1, 0], [], []>} : vector<4x32xbf16>, vector<128x32xbf16>, vector<4x128xf32> -> vector<4x128xf32>
    %c0_15 = arith.constant 0 : index
    %c0_16 = arith.constant 0 : index
    %20 = vector.load %arg7[%c0_15, %c0_16] : memref<4x1xf32, #tpu.memory_space<vmem>>, vector<4x1xf32>
    %21 = vector.broadcast %20 : vector<4x1xf32> to vector<4x128xf32>
    %22 = arith.addf %19, %21 : vector<4x128xf32>
    %c0_17 = arith.constant 0 : index
    %c0_18 = arith.constant 0 : index
    %23 = vector.load %arg8[%c0_17, %c0_18] : memref<4x128xf32, #tpu.memory_space<vmem>>, vector<4x128xf32>
    tpu.vector_store %arg8[%c0_17, %c0_18], %22 {strides = array<i32>} : memref<4x128xf32, #tpu.memory_space<vmem>>, vector<4x128xf32>,
    return
  }
  func.func @transform_0(%arg0: i32) -> (i32, i32) {
    %c0_i32 = arith.constant 0 : i32
    %c0_i32_0 = arith.constant 0 : i32
    return %arg0, %c0_i32 : i32, i32
  }
  func.func @transform_1(%arg0: i32) -> (i32, i32) {
    %c0_i32 = arith.constant 0 : i32
    %c0_i32_0 = arith.constant 0 : i32
    %c0_i32_1 = arith.constant 0 : i32
    return %c0_i32, %c0_i32_0 : i32, i32
  }
  func.func @transform_2(%arg0: i32) -> (i32, i32) {
    %c0_i32 = arith.constant 0 : i32
    %c0_i32_0 = arith.constant 0 : i32
    %c0_i32_1 = arith.constant 0 : i32
    return %c0_i32, %c0_i32_0 : i32, i32
  }
  func.func @transform_3(%arg0: i32) -> (i32, i32) {
    %c0_i32 = arith.constant 0 : i32
    %c0_i32_0 = arith.constant 0 : i32
    %c0_i32_1 = arith.constant 0 : i32
    return %c0_i32, %c0_i32_0 : i32, i32
  }
  func.func @transform_4(%arg0: i32) -> (i32, i32) {
    %c0_i32 = arith.constant 0 : i32
    %c0_i32_0 = arith.constant 0 : i32
    %c0_i32_1 = arith.constant 0 : i32
    return %c0_i32, %c0_i32_0 : i32, i32
  }
  func.func @transform_5(%arg0: i32) -> (i32, i32) {
    %c0_i32 = arith.constant 0 : i32
    %c0_i32_0 = arith.constant 0 : i32
    %c0_i32_1 = arith.constant 0 : i32
    return %c0_i32, %c0_i32_0 : i32, i32
  }
  func.func @transform_6(%arg0: i32) -> (i32, i32) {
    %c0_i32 = arith.constant 0 : i32
    %c0_i32_0 = arith.constant 0 : i32
    %c0_i32_1 = arith.constant 0 : i32
    return %c0_i32, %c0_i32_0 : i32, i32
  }
  func.func @transform_7(%arg0: i32) -> (i32, i32) {
    %c0_i32 = arith.constant 0 : i32
    %c0_i32_0 = arith.constant 0 : i32
    return %c0_i32, %arg0 : i32, i32
  }
}

</mosaic_0001>

<llo_original>
// kernel: tpu_custom_call.1
$region0: #{tpu_custom_call.1}
  #allocation0 [shape = 'u32[]', space=smem, size = 0x4, offset = 0x4, fixed_abs, tag = 'smem constant byte address 0x4 - core index']
  #allocation1 [shape = 'u32[144,128]{1,0:T(1,128)}', space=vmem, size = 0x12000, scoped, tag = 'internal scratch']
  %s0 = inlined_call_operand.vmem [shape: f32[128,16], index: 0, kind: input, shape index: {}]
  %s1 = inlined_call_operand.vmem [shape: bf16[16,32], index: 1, kind: input, shape index: {}]
  %s2 = inlined_call_operand.vmem [shape: f32[1,32], index: 2, kind: input, shape index: {}]
  %s3 = inlined_call_operand.vmem [shape: bf16[32,32], index: 3, kind: input, shape index: {}]
  %s4 = inlined_call_operand.vmem [shape: f32[1,32], index: 4, kind: input, shape index: {}]
  %s5 = inlined_call_operand.vmem [shape: bf16[4,32], index: 5, kind: input, shape index: {}]
  %s6 = inlined_call_operand.vmem [shape: f32[4,1], index: 6, kind: input, shape index: {}]
  %s7 = inlined_call_operand.hbm [shape: f32[4,128], index: 7, kind: output, shape index: {}]
  %s8 = sld [smem:[#allocation0]]
  $region38: #{tpu_custom_call.1} parent=0
    _
  %s10 = ssub.s32 1, %s8
  %s11 = scalar_select 0, %s10, %s8
  $region1: #{tpu_custom_call.1} parent=0
    #allocation2 [shape = 'u8[2048]{0}', space=vmem, size = 0x800, scoped, tag = 'output window, operand 0, single buffered']
    #allocation3 [shape = 's32[1]{0}', space=sflag, size = 0x4, scoped, tag = 'scoped memory for tpu_custom_call.1']
    %12 = vsyncpa [#allocation3], 0
    // Predicated region
    $region2: #{tpu_custom_call.1} parent=1 // pred_check
      _
    $region3: #{tpu_custom_call.1} parent=1 // pred_check_branch
      %14 = sbr.rel (0) target = $region5
    $region4: #{tpu_custom_call.1} parent=1 // pred_region
      _
    $region5: #{tpu_custom_call.1} parent=1 // pred_fallthru
      _
    // Predicated region
    $region6: #{tpu_custom_call.1} parent=1 // pred_check
      _
    $region7: #{tpu_custom_call.1} parent=1 // pred_check_branch
      %16 = sbr.rel (0) target = $region9
    $region8: #{tpu_custom_call.1} parent=1 // pred_region
      _
    $region9: #{tpu_custom_call.1} parent=1 // pred_fallthru
      _
    // Predicated region
    $region10: #{tpu_custom_call.1} parent=1 // pred_check
      _
    $region11: #{tpu_custom_call.1} parent=1 // pred_check_branch
      %18 = sbr.rel (0) target = $region13
    $region12: #{tpu_custom_call.1} parent=1 // pred_region
      _
    $region13: #{tpu_custom_call.1} parent=1 // pred_fallthru
      _
    // Predicated region
    $region14: #{tpu_custom_call.1} parent=1 // pred_check
      _
    $region15: #{tpu_custom_call.1} parent=1 // pred_check_branch
      %20 = sbr.rel (0) target = $region17
    $region16: #{tpu_custom_call.1} parent=1 // pred_region
      _
    $region17: #{tpu_custom_call.1} parent=1 // pred_fallthru
      _
    // Predicated region
    $region18: #{tpu_custom_call.1} parent=1 // pred_check
      _
    $region19: #{tpu_custom_call.1} parent=1 // pred_check_branch
      %22 = sbr.rel (0) target = $region21
    $region20: #{tpu_custom_call.1} parent=1 // pred_region
      _
    $region21: #{tpu_custom_call.1} parent=1 // pred_fallthru
      _
    // Predicated region
    $region22: #{tpu_custom_call.1} parent=1 // pred_check
      _
    $region23: #{tpu_custom_call.1} parent=1 // pred_check_branch
      %24 = sbr.rel (0) target = $region25
    $region24: #{tpu_custom_call.1} parent=1 // pred_region
      _
    $region25: #{tpu_custom_call.1} parent=1 // pred_fallthru
      _
    // Predicated region
    $region26: #{tpu_custom_call.1} parent=1 // pred_check
      _
    $region27: #{tpu_custom_call.1} parent=1 // pred_check_branch
      %26 = sbr.rel (0) target = $region29
    $region28: #{tpu_custom_call.1} parent=1 // pred_region
      _
    $region29: #{tpu_custom_call.1} parent=1 // pred_fallthru
      _
    %v28 = vld [vmem:[%s0] sm:$0xff]
    %v29 = vld [vmem:[%s0 + $0x8] sm:$0xff]
    %v30 = vld [vmem:[%s0 + $0x10] sm:$0xff]
    %v31 = vld [vmem:[%s0 + $0x18] sm:$0xff]
    %v32 = vld [vmem:[%s0 + $0x20] sm:$0xff]
    %v33 = vld [vmem:[%s0 + $0x28] sm:$0xff]
    %v34 = vld [vmem:[%s0 + $0x30] sm:$0xff]
    %v35 = vld [vmem:[%s0 + $0x38] sm:$0xff]
    %v36 = vld [vmem:[%s0 + $0x40] sm:$0xff]
    %v37 = vld [vmem:[%s0 + $0x48] sm:$0xff]
    %v38 = vld [vmem:[%s0 + $0x50] sm:$0xff]
    %v39 = vld [vmem:[%s0 + $0x58] sm:$0xff]
    %v40 = vld [vmem:[%s0 + $0x60] sm:$0xff]
    %v41 = vld [vmem:[%s0 + $0x68] sm:$0xff]
    %v42 = vld [vmem:[%s0 + $0x70] sm:$0xff]
    %v43 = vld [vmem:[%s0 + $0x78] sm:$0xff]
    %v44 = vpack.c.bf16 %v29, %v28
    %v45 = vpack.c.bf16 %v31, %v30
    %v46 = vpack.c.bf16 %v33, %v32
    %v47 = vpack.c.bf16 %v35, %v34
    %v48 = vpack.c.bf16 %v37, %v36
    %v49 = vpack.c.bf16 %v39, %v38
    %v50 = vpack.c.bf16 %v41, %v40
    %v51 = vpack.c.bf16 %v43, %v42
    %v52 = vld [vmem:[%s1] sm:$0xf]
    %v53 = vld [vmem:[%s1 + $0x4] sm:$0xf]
    %v54 = vld [vmem:[%s2] sm:$0x1]
    %v56 = vlaneseq
    %v57 = vshrl.u32 %v56, 7
    %v58 = vsub.s32 0, %v57
    %v59 = vrot.slane %v54, %v58
    %v63 = vunpack.c.l.b16 %v52
    %v64 = vunpack.c.l.b16 %v53
    %v65 = vpack.c.b16 %v64, %v63
    %vm67 = vcmask 130048
    %v69 = vsel %vm67, %v44, 0
    %v72 = vsel %vm67, %v45, 0
    %v75 = vsel %vm67, %v46, 0
    %v78 = vsel %vm67, %v47, 0
    %v81 = vsel %vm67, %v48, 0
    %v84 = vsel %vm67, %v49, 0
    %v87 = vsel %vm67, %v50, 0
    %v90 = vsel %vm67, %v51, 0
    %92 = vmatprep.subr.bf16.mxu0 0
    %93 = vmatpush1.bf16.msra.mxu0 %v65
    %94 = vmatprep.subr.bf16.mxu0 0
    %95 = vmatpush1.bf16.msra.mxu0 0
    %96 = vmatprep.subr.bf16.mxu0 0
    %97 = vmatpush1.bf16.msra.mxu0 0
    %98 = vmatprep.subr.bf16.mxu0 0
    %99 = vmatpush1.bf16.msra.mxu0 0
    %100 = vmatprep.subr.bf16.mxu0 0
    %101 = vmatpush1.bf16.msra.mxu0 0
    %102 = vmatprep.subr.bf16.mxu0 0
    %103 = vmatpush1.bf16.msra.mxu0 0
    %104 = vmatprep.subr.bf16.mxu0 0
    %105 = vmatpush1.bf16.msra.mxu0 0
    %106 = vmatprep.subr.bf16.mxu0 0
    %107 = vmatpush1.bf16.msra.mxu0 0
    %108 = vmatprep.subr.bf16.mxu0 0
    %109 = vmatpush1.bf16.msra.mxu0 0
    %110 = vmatprep.subr.bf16.mxu0 0
    %111 = vmatpush1.bf16.msra.mxu0 0
    %112 = vmatprep.subr.bf16.mxu0 0
    %113 = vmatpush1.bf16.msra.mxu0 0
    %114 = vmatprep.subr.bf16.mxu0 0
    %115 = vmatpush1.bf16.msra.mxu0 0
    %116 = vmatprep.subr.bf16.mxu0 0
    %117 = vmatpush1.bf16.msra.mxu0 0
    %118 = vmatprep.subr.bf16.mxu0 0
    %119 = vmatpush1.bf16.msra.mxu0 0
    %120 = vmatprep.subr.bf16.mxu0 0
    %121 = vmatpush1.bf16.msra.mxu0 0
    %122 = vmatprep.subr.bf16.mxu0 0
    %123 = vmatpush1.bf16.msra.mxu0 0
    %124 = vmatprep.mubr.bf16.mxu0 0
    %125 = vmatmul.mubr.bf16.gmra.mrb[0].mxu0 %v69
    %v126 = vpop.f32.mrb[0].mxu0
    %v127 = vadd.f32 %v59, %v126
    %v128 = vpop.f32.mrb[0].mxu0
    %v129 = vpop.f32.mrb[0].mxu0
    %v130 = vadd.f32 %v59, %v129
    %v131 = vpop.f32.mrb[0].mxu0
    %132 = vmatprep.mubr.bf16.mxu0 0
    %133 = vmatmul.mubr.bf16.gmra.mrb[0].mxu0 %v72
    %v134 = vpop.f32.mrb[0].mxu0
    %v135 = vadd.f32 %v59, %v134
    %v136 = vpop.f32.mrb[0].mxu0
    %v137 = vpop.f32.mrb[0].mxu0
    %v138 = vadd.f32 %v59, %v137
    %v139 = vpop.f32.mrb[0].mxu0
    %140 = vmatprep.mubr.bf16.mxu0 0
    %141 = vmatmul.mubr.bf16.gmra.mrb[0].mxu0 %v75
    %v142 = vpop.f32.mrb[0].mxu0
    %v143 = vadd.f32 %v59, %v142
    %v144 = vpop.f32.mrb[0].mxu0
    %v145 = vpop.f32.mrb[0].mxu0
    %v146 = vadd.f32 %v59, %v145
    %v147 = vpop.f32.mrb[0].mxu0
    %148 = vmatprep.mubr.bf16.mxu0 0
    %149 = vmatmul.mubr.bf16.gmra.mrb[0].mxu0 %v78
    %v150 = vpop.f32.mrb[0].mxu0
    %v151 = vadd.f32 %v59, %v150
    %v152 = vpop.f32.mrb[0].mxu0
    %v153 = vpop.f32.mrb[0].mxu0
    %v154 = vadd.f32 %v59, %v153
    %v155 = vpop.f32.mrb[0].mxu0
    %156 = vmatprep.mubr.bf16.mxu0 0
    %157 = vmatmul.mubr.bf16.gmra.mrb[0].mxu0 %v81
    %v158 = vpop.f32.mrb[0].mxu0
    %v159 = vadd.f32 %v59, %v158
    %v160 = vpop.f32.mrb[0].mxu0
    %v161 = vpop.f32.mrb[0].mxu0
    %v162 = vadd.f32 %v59, %v161
    %v163 = vpop.f32.mrb[0].mxu0
    %164 = vmatprep.mubr.bf16.mxu0 0
    %165 = vmatmul.mubr.bf16.gmra.mrb[0].mxu0 %v84
    %v166 = vpop.f32.mrb[0].mxu0
    %v167 = vadd.f32 %v59, %v166
    %v168 = vpop.f32.mrb[0].mxu0
    %v169 = vpop.f32.mrb[0].mxu0
    %v170 = vadd.f32 %v59, %v169
    %v171 = vpop.f32.mrb[0].mxu0
    %172 = vmatprep.mubr.bf16.mxu0 0
    %173 = vmatmul.mubr.bf16.gmra.mrb[0].mxu0 %v87
    %v174 = vpop.f32.mrb[0].mxu0
    %v175 = vadd.f32 %v59, %v174
    %v176 = vpop.f32.mrb[0].mxu0
    %v177 = vpop.f32.mrb[0].mxu0
    %v178 = vadd.f32 %v59, %v177
    %v179 = vpop.f32.mrb[0].mxu0
    %180 = vmatprep.mubr.bf16.mxu0 0
    %181 = vmatmul.mubr.bf16.gmra.mrb[0].mxu0 %v90
    %v182 = vpop.f32.mrb[0].mxu0
    %v183 = vadd.f32 %v59, %v182
    %v184 = vpop.f32.mrb[0].mxu0
    %v185 = vpop.f32.mrb[0].mxu0
    %v186 = vadd.f32 %v59, %v185
    %v187 = vpop.f32.mrb[0].mxu0
    %188 = vdwg.mxu0
    %v189 = vmax.f32 %v127, 0.0
    %v190 = vmax.f32 %v130, 0.0
    %v191 = vmax.f32 %v135, 0.0
    %v192 = vmax.f32 %v138, 0.0
    %v193 = vmax.f32 %v143, 0.0
    %v194 = vmax.f32 %v146, 0.0
    %v195 = vmax.f32 %v151, 0.0
    %v196 = vmax.f32 %v154, 0.0
    %v197 = vmax.f32 %v159, 0.0
    %v198 = vmax.f32 %v162, 0.0
    %v199 = vmax.f32 %v167, 0.0
    %v200 = vmax.f32 %v170, 0.0
    %v201 = vmax.f32 %v175, 0.0
    %v202 = vmax.f32 %v178, 0.0
    %v203 = vmax.f32 %v183, 0.0
    %v204 = vmax.f32 %v186, 0.0
    %v205 = vpack.c.bf16 %v190, %v189
    %v206 = vpack.c.bf16 %v192, %v191
    %v207 = vpack.c.bf16 %v194, %v193
    %v208 = vpack.c.bf16 %v196, %v195
    %v209 = vpack.c.bf16 %v198, %v197
    %v210 = vpack.c.bf16 %v200, %v199
    %v211 = vpack.c.bf16 %v202, %v201
    %v212 = vpack.c.bf16 %v204, %v203
    %v213 = vld [vmem:[%s3] sm:$0xf]
    %v214 = vld [vmem:[%s3 + $0x4] sm:$0xf]
    %v215 = vld [vmem:[%s3 + $0x8] sm:$0xf]
    %v216 = vld [vmem:[%s3 + $0xc] sm:$0xf]
    %v217 = vld [vmem:[%s4] sm:$0x1]
    %v219 = vlaneseq
    %v220 = vshrl.u32 %v219, 7
    %v221 = vsub.s32 0, %v220
    %v222 = vrot.slane %v217, %v221
    %v228 = vunpack.c.l.b16 %v213
    %v229 = vunpack.c.l.b16 %v214
    %v230 = vunpack.c.l.b16 %v215
    %v231 = vunpack.c.l.b16 %v216
    %v232 = vpack.c.b16 %v229, %v228
    %v233 = vpack.c.b16 %v231, %v230
    %vm236 = vcmask 261120
    %v238 = vsel %vm236, %v205, 0
    %v241 = vsel %vm236, %v206, 0
    %v244 = vsel %vm236, %v207, 0
    %v247 = vsel %vm236, %v208, 0
    %v250 = vsel %vm236, %v209, 0
    %v253 = vsel %vm236, %v210, 0
    %v256 = vsel %vm236, %v211, 0
    %v259 = vsel %vm236, %v212, 0
    %261 = vmatprep.subr.bf16.mxu0 0
    %262 = vmatpush1.bf16.msra.mxu0 %v232
    %263 = vmatprep.subr.bf16.mxu0 0
    %264 = vmatpush1.bf16.msra.mxu0 %v233
    %265 = vmatprep.subr.bf16.mxu0 0
    %266 = vmatpush1.bf16.msra.mxu0 0
    %267 = vmatprep.subr.bf16.mxu0 0
    %268 = vmatpush1.bf16.msra.mxu0 0
    %269 = vmatprep.subr.bf16.mxu0 0
    %270 = vmatpush1.bf16.msra.mxu0 0
    %271 = vmatprep.subr.bf16.mxu0 0
    %272 = vmatpush1.bf16.msra.mxu0 0
    %273 = vmatprep.subr.bf16.mxu0 0
    %274 = vmatpush1.bf16.msra.mxu0 0
    %275 = vmatprep.subr.bf16.mxu0 0
    %276 = vmatpush1.bf16.msra.mxu0 0
    %277 = vmatprep.subr.bf16.mxu0 0
    %278 = vmatpush1.bf16.msra.mxu0 0
    %279 = vmatprep.subr.bf16.mxu0 0
    %280 = vmatpush1.bf16.msra.mxu0 0
    %281 = vmatprep.subr.bf16.mxu0 0
    %282 = vmatpush1.bf16.msra.mxu0 0
    %283 = vmatprep.subr.bf16.mxu0 0
    %284 = vmatpush1.bf16.msra.mxu0 0
    %285 = vmatprep.subr.bf16.mxu0 0
    %286 = vmatpush1.bf16.msra.mxu0 0
    %287 = vmatprep.subr.bf16.mxu0 0
    %288 = vmatpush1.bf16.msra.mxu0 0
    %289 = vmatprep.subr.bf16.mxu0 0
    %290 = vmatpush1.bf16.msra.mxu0 0
    %291 = vmatprep.subr.bf16.mxu0 0
    %292 = vmatpush1.bf16.msra.mxu0 0
    %293 = vmatprep.mubr.bf16.mxu0 0
    %294 = vmatmul.mubr.bf16.gmra.mrb[0].mxu0 %v238
    %v295 = vpop.f32.mrb[0].mxu0
    %v296 = vadd.f32 %v222, %v295
    %v297 = vpop.f32.mrb[0].mxu0
    %v298 = vpop.f32.mrb[0].mxu0
    %v299 = vadd.f32 %v222, %v298
    %v300 = vpop.f32.mrb[0].mxu0
    %301 = vmatprep.mubr.bf16.mxu0 0
    %302 = vmatmul.mubr.bf16.gmra.mrb[0].mxu0 %v241
    %v303 = vpop.f32.mrb[0].mxu0
    %v304 = vadd.f32 %v222, %v303
    %v305 = vpop.f32.mrb[0].mxu0
    %v306 = vpop.f32.mrb[0].mxu0
    %v307 = vadd.f32 %v222, %v306
    %v308 = vpop.f32.mrb[0].mxu0
    %309 = vmatprep.mubr.bf16.mxu0 0
    %310 = vmatmul.mubr.bf16.gmra.mrb[0].mxu0 %v244
    %v311 = vpop.f32.mrb[0].mxu0
    %v312 = vadd.f32 %v222, %v311
    %v313 = vpop.f32.mrb[0].mxu0
    %v314 = vpop.f32.mrb[0].mxu0
    %v315 = vadd.f32 %v222, %v314
    %v316 = vpop.f32.mrb[0].mxu0
    %317 = vmatprep.mubr.bf16.mxu0 0
    %318 = vmatmul.mubr.bf16.gmra.mrb[0].mxu0 %v247
    %v319 = vpop.f32.mrb[0].mxu0
    %v320 = vadd.f32 %v222, %v319
    %v321 = vpop.f32.mrb[0].mxu0
    %v322 = vpop.f32.mrb[0].mxu0
    %v323 = vadd.f32 %v222, %v322
    %v324 = vpop.f32.mrb[0].mxu0
    %325 = vmatprep.mubr.bf16.mxu0 0
    %326 = vmatmul.mubr.bf16.gmra.mrb[0].mxu0 %v250
    %v327 = vpop.f32.mrb[0].mxu0
    %v328 = vadd.f32 %v222, %v327
    %v329 = vpop.f32.mrb[0].mxu0
    %v330 = vpop.f32.mrb[0].mxu0
    %v331 = vadd.f32 %v222, %v330
    %v332 = vpop.f32.mrb[0].mxu0
    %333 = vmatprep.mubr.bf16.mxu0 0
    %334 = vmatmul.mubr.bf16.gmra.mrb[0].mxu0 %v253
    %v335 = vpop.f32.mrb[0].mxu0
    %v336 = vadd.f32 %v222, %v335
    %v337 = vpop.f32.mrb[0].mxu0
    %v338 = vpop.f32.mrb[0].mxu0
    %v339 = vadd.f32 %v222, %v338
    %v340 = vpop.f32.mrb[0].mxu0
    %341 = vmatprep.mubr.bf16.mxu0 0
    %342 = vmatmul.mubr.bf16.gmra.mrb[0].mxu0 %v256
    %v343 = vpop.f32.mrb[0].mxu0
    %v344 = vadd.f32 %v222, %v343
    %v345 = vpop.f32.mrb[0].mxu0
    %v346 = vpop.f32.mrb[0].mxu0
    %v347 = vadd.f32 %v222, %v346
    %v348 = vpop.f32.mrb[0].mxu0
    %349 = vmatprep.mubr.bf16.mxu0 0
    %350 = vmatmul.mubr.bf16.gmra.mrb[0].mxu0 %v259
    %v351 = vpop.f32.mrb[0].mxu0
    %v352 = vadd.f32 %v222, %v351
    %v353 = vpop.f32.mrb[0].mxu0
    %v354 = vpop.f32.mrb[0].mxu0
    %v355 = vadd.f32 %v222, %v354
    %v356 = vpop.f32.mrb[0].mxu0
    %357 = vdwg.mxu0
    %v358 = vmax.f32 %v296, 0.0
    %v359 = vmax.f32 %v299, 0.0
    %v360 = vmax.f32 %v304, 0.0
    %v361 = vmax.f32 %v307, 0.0
    %v362 = vmax.f32 %v312, 0.0
    %v363 = vmax.f32 %v315, 0.0
    %v364 = vmax.f32 %v320, 0.0
    %v365 = vmax.f32 %v323, 0.0
    %v366 = vmax.f32 %v328, 0.0
    %v367 = vmax.f32 %v331, 0.0
    %v368 = vmax.f32 %v336, 0.0
    %v369 = vmax.f32 %v339, 0.0
    %v370 = vmax.f32 %v344, 0.0
    %v371 = vmax.f32 %v347, 0.0
    %v372 = vmax.f32 %v352, 0.0
    %v373 = vmax.f32 %v355, 0.0
    %v374 = vld [vmem:[%s5] sm:$0x3]
    %v375 = vpack.c.bf16 %v359, %v358
    %v376 = vpack.c.bf16 %v361, %v360
    %v377 = vpack.c.bf16 %v363, %v362
    %v378 = vpack.c.bf16 %v365, %v364
    %v379 = vpack.c.bf16 %v367, %v366
    %v380 = vpack.c.bf16 %v369, %v368
    %v381 = vpack.c.bf16 %v371, %v370
    %v382 = vpack.c.bf16 %v373, %v372
    %v383 = vld [vmem:[%s6] sm:$0xf]
    %385 = vset.pattern.permute.xlu0 0
    %386 = vperm.xlu0 %385, %v383
    %v387 = vpop.permute.xlu0 %386
    %v390 = vsel %vm236, %v374, 0
    %v393 = vsel %vm236, %v375, 0
    %v396 = vsel %vm236, %v376, 0
    %v399 = vsel %vm236, %v377, 0
    %v402 = vsel %vm236, %v378, 0
    %v405 = vsel %vm236, %v379, 0
    %v408 = vsel %vm236, %v380, 0
    %v411 = vsel %vm236, %v381, 0
    %v414 = vsel %vm236, %v382, 0
    %416 = vmatprep.subr.bf16.mxu0 0
    %417 = vmatpush1.bf16.xpose.msra.mxu0 %v393
    %418 = vmatprep.subr.bf16.mxu0 0
    %419 = vmatpush1.bf16.xpose.msra.mxu0 %v396
    %420 = vmatprep.subr.bf16.mxu0 0
    %421 = vmatpush1.bf16.xpose.msra.mxu0 %v399
    %422 = vmatprep.subr.bf16.mxu0 0
    %423 = vmatpush1.bf16.xpose.msra.mxu0 %v402
    %424 = vmatprep.subr.bf16.mxu0 0
    %425 = vmatpush1.bf16.xpose.msra.mxu0 %v405
    %426 = vmatprep.subr.bf16.mxu0 0
    %427 = vmatpush1.bf16.xpose.msra.mxu0 %v408
    %428 = vmatprep.subr.bf16.mxu0 0
    %429 = vmatpush1.bf16.xpose.msra.mxu0 %v411
    %430 = vmatprep.subr.bf16.mxu0 0
    %431 = vmatpush1.bf16.xpose.msra.mxu0 %v414
    %432 = vmatprep.subr.bf16.mxu0 0
    %433 = vmatpush1.bf16.xpose.msra.mxu0 0
    %434 = vmatprep.subr.bf16.mxu0 0
    %435 = vmatpush1.bf16.xpose.msra.mxu0 0
    %436 = vmatprep.subr.bf16.mxu0 0
    %437 = vmatpush1.bf16.xpose.msra.mxu0 0
    %438 = vmatprep.subr.bf16.mxu0 0
    %439 = vmatpush1.bf16.xpose.msra.mxu0 0
    %440 = vmatprep.subr.bf16.mxu0 0
    %441 = vmatpush1.bf16.xpose.msra.mxu0 0
    %442 = vmatprep.subr.bf16.mxu0 0
    %443 = vmatpush1.bf16.xpose.msra.mxu0 0
    %444 = vmatprep.subr.bf16.mxu0 0
    %445 = vmatpush1.bf16.xpose.msra.mxu0 0
    %446 = vmatprep.subr.bf16.mxu0 0
    %447 = vmatpush1.bf16.xpose.msra.mxu0 0
    %448 = vmatprep.mubr.bf16.mxu0 0
    %449 = vmatmul.mubr.bf16.gmra.mrb[0].mxu0 %v390
    %v450 = vpop.f32.mrb[0].mxu0
    %v451 = vadd.f32 %v387, %v450
    %v452 = vpop.f32.mrb[0].mxu0
    %v453 = vpop.f32.mrb[0].mxu0
    %v454 = vpop.f32.mrb[0].mxu0
    %455 = vdwg.mxu0
    %456 = vst [vmem:[#allocation2] sm:$0xf] %v451
    // Predicated region
    $region30: #{tpu_custom_call.1} parent=1 // pred_check
      _
    $region31: #{tpu_custom_call.1} parent=1 // pred_check_branch
      %458 = sbr.rel (0) target = $region33
    $region32: #{tpu_custom_call.1} parent=1 // pred_region
      %s460 = ssub.s32 64, 64
      %461 = vsyncadd [#allocation3], %s460
      %s463 = sshll.u32 [#allocation2], 4
      %s464 = int_to_ptr.vmem [resolvable:$true] %s463
      %466 = dma.vmem_to_hbm [thread:$0]  %s464, 64, %s7, [#allocation3]
    $region33: #{tpu_custom_call.1} parent=1 // pred_fallthru
      _
    // Predicated region
    $region34: #{tpu_custom_call.1} parent=1 // pred_check
      _
    $region35: #{tpu_custom_call.1} parent=1 // pred_check_branch
      %468 = sbr.rel (0) target = $region37
    $region36: #{tpu_custom_call.1} parent=1 // pred_region
      %469 = dma.done [#allocation3], 64
    $region37: #{tpu_custom_call.1} parent=1 // pred_fallthru
      _
    %470 = vsyncpa [#allocation3], 1

</llo_original>
